<compile_context>
chip_gen: v7x
topology: tpu7x:2x2x1
jax: 0.10.0
libtpu: 0.0.40
codegen_flags: <defaults>
</compile_context>

<pallas_src>
import functools

import jax
import jax.numpy as jnp
from jax.experimental import pallas as pl
from jax.experimental.pallas import tpu as pltpu


def _round_up(x, m):
    return ((x + m - 1) // m) * m


def fullmodel_kernel(x_ref, t_ref, w1_ref, b1_ref, w2_ref, b2_ref,
                     wc_ref, bc_ref, logits_ref, loss_ref, acc_ref,
                     *, n_classes, hw_total, inv_hw, mask_hw):
    """grid = (B_tiles, HW_tiles); HW (reduction) axis is last / 'arbitrary'.

    Per HW tile: accumulate channel partial sums into the VMEM scratch.
    At the last HW tile: finish pooling, run the SE excitation + head, compute the
    per-sample cross-entropy, and do lane-dense stores.
    """
    hw_id = pl.program_id(1)

    @pl.when(hw_id == 0)
    def _init():
        acc_ref[...] = jnp.zeros_like(acc_ref)

    # ---- squeeze: partial channel sum over this spatial tile (f32 accumulation) ----
    xv = x_ref[...].astype(jnp.float32)                              # [TB, C, THW]
    if mask_hw:
        # ragged last HW tile: zero the out-of-range (unspecified) tail before summing
        tile_hw = xv.shape[2]
        pos = jax.lax.broadcasted_iota(jnp.int32, xv.shape, 2)
        xv = jnp.where(pos < (hw_total - hw_id * tile_hw), xv, 0.0)
    acc_ref[...] += jnp.sum(xv, axis=2)                              # [TB, C]

    @pl.when(hw_id == pl.num_programs(1) - 1)
    def _finalize():
        pooled = acc_ref[...] * inv_hw                               # [TB, C]

        # ---- excitation: FC -> ReLU -> FC -> sigmoid -> channel scale ----
        h = jnp.dot(pooled, w1_ref[...],
                    preferred_element_type=jnp.float32) + b1_ref[...]     # [TB, CR_PAD]
        h = jnp.maximum(h, 0.0)
        s = jnp.dot(h, w2_ref[...],
                    preferred_element_type=jnp.float32) + b2_ref[...]     # [TB, C]
        s = jax.nn.sigmoid(s)
        feat = pooled * s                                            # [TB, C]

        # ---- classifier head (padded to N_PAD classes -> lane-dense store) ----
        logits = jnp.dot(feat, wc_ref[...],
                         preferred_element_type=jnp.float32) + bc_ref[...]  # [TB, N_PAD]
        logits_ref[...] = logits[:, None, :]

        # ---- labels = argmax(targets) (first max on ties == torch.topk(.,1)) ----
        # NOTE: exact float equality; matches torch for one-hot / integer-valued targets.
        t = t_ref[...][:, 0, :]                                      # [TB, N_PAD]
        neg = jnp.finfo(jnp.float32).min
        n_pad = t.shape[1]
        col = jax.lax.broadcasted_iota(jnp.int32, t.shape, 1)
        valid = col < n_classes                                      # mask padded classes
        t_m = jnp.where(valid, t, neg)
        tmax = jnp.max(t_m, axis=1, keepdims=True)
        label = jnp.min(jnp.where(t_m == tmax, col, n_pad), axis=1, keepdims=True)
        onehot = (col == label).astype(jnp.float32)

        # ---- per-sample cross-entropy over the *real* classes only ----
        lmask = jnp.where(valid, logits, neg)
        m = jnp.max(lmask, axis=1, keepdims=True)
        lse = jnp.log(jnp.sum(jnp.exp(lmask - m), axis=1, keepdims=True)) + m
        per = jnp.sum(onehot * (lse - logits), axis=1, keepdims=True)    # [TB, 1]
        # broadcast across 128 lanes so the store is an un-masked full-width vst
        loss_ref[...] = jnp.broadcast_to(per[:, None, :], loss_ref.shape)


def _vmem_capacity_bytes():
    try:
        return int(pltpu.get_tpu_info().vmem_capacity_bytes)
    except Exception:
        return 64 * 2 ** 20        # conservative (v7x-sized) default


def _pick_tile_b(batch, cap=128):
    if batch <= 1:
        return 1
    limit = max(1, min(cap, batch // 2))        # keep >=2 B blocks for v7x's 2 TCs
    for tb in range(limit, 0, -1):              # prefer exact divisors (no ragged tail)
        if batch % tb == 0:
            return tb
    return 1


def _pick_tile_hw(hw, cap_elems):
    """Largest legal spatial tile <= cap_elems; prefer exact divisors of hw."""
    if hw <= cap_elems or hw <= 128:
        return hw, False                        # single full-extent tile (always legal)
    cap128 = max(128, (cap_elems // 128) * 128)
    start = min(cap128, (hw // 128) * 128)
    for cand in range(start, 127, -128):        # multiples of 128 (lane tiling) only
        if hw % cand == 0:
            return cand, False
    return cap128, True                         # ragged tail -> masked in-kernel


def full_model_forward(targets, x, params, *, tile_b=None, tile_hw=None):
    """targets: [B, N] f32 (one-hot-ish scores), x: [B, C, H, W] f32 or bf16.
    Returns (loss[1], outputs[B, N]) — same as the PyTorch FullModel."""
    B, C, H, W = x.shape
    N = targets.shape[1]
    hw = H * W
    w1, b1, w2, b2, wc, bc = params
    Cr = w1.shape[1]

    # ---- lane-dense padding for the tiny class / excitation dims only ----
    n_pad = _round_up(max(N, 1), 128)
    cr_pad = _round_up(max(Cr, 1), 128)
    x_item = jnp.dtype(x.dtype).itemsize

    # ---- generation-aware VMEM budget (v7x: 64 MiB/TC, v5e/v6e: 128 MiB) ----
    vmem_cap = _vmem_capacity_bytes()
    vmem_limit = max(16 << 20, min(vmem_cap * 3 // 4, vmem_cap - (8 << 20)))

    if tile_b is None:
        tile_b = _pick_tile_b(B)

    # fixed (non-x) footprint: double-buffered weights/biases/targets blocks,
    # double-buffered outputs, pooled-sum scratch.
    w_bytes = 4 * (C * cr_pad + cr_pad + cr_pad * C + C + C * n_pad + n_pad)
    fixed = (2 * (w_bytes + tile_b * n_pad * 4)
             + 2 * (tile_b * n_pad * 4 + tile_b * 128 * 4)
             + tile_b * C * 4)
    # TODO(synk): mark constant-index weight specs pipeline_mode=pl.Buffered(1) once
    # single-buffered pallas_call operands are universally supported; until then their
    # 2x footprint is charged to `fixed` above.

    if tile_hw is None:
        x_budget = max(0, vmem_limit - fixed - (4 << 20)) // 2       # x is double-buffered
        cap_elems = max(128, x_budget // (x_item * tile_b * C))
        tile_hw, mask_hw = _pick_tile_hw(hw, cap_elems)
    else:
        assert tile_hw == hw or tile_hw % 128 == 0, "tile_hw must be hw or a multiple of 128"
        mask_hw = (hw % tile_hw) != 0

    grid = (pl.cdiv(B, tile_b), pl.cdiv(hw, tile_hw))

    # x is used in place: free reshape only, no pad / dtype copy of the big tensor.
    x_flat = x.reshape(B, C, hw)

    # only the tiny operands get padded copies
    t_p = jnp.zeros((B, 1, n_pad), jnp.float32).at[:, 0, :N].set(targets.astype(jnp.float32))
    w1_p = jnp.zeros((C, cr_pad), jnp.float32).at[:, :Cr].set(w1)
    b1_p = jnp.zeros((1, cr_pad), jnp.float32).at[:, :Cr].set(b1.reshape(1, Cr))
    w2_p = jnp.zeros((cr_pad, C), jnp.float32).at[:Cr, :].set(w2)
    b2_p = b2.reshape(1, C).astype(jnp.float32)
    wc_p = jnp.zeros((C, n_pad), jnp.float32).at[:, :N].set(wc)
    bc_p = jnp.zeros((1, n_pad), jnp.float32).at[:, :N].set(bc.reshape(1, N))

    kernel = functools.partial(fullmodel_kernel, n_classes=N, hw_total=hw,
                               inv_hw=1.0 / hw, mask_hw=mask_hw)

    def const(shape):
        return pl.BlockSpec(shape, lambda b, h: (0,) * len(shape))

    cost = pl.CostEstimate(
        flops=int(B * C * hw + 2 * B * (2 * C * cr_pad + C * n_pad)),
        transcendentals=int(B * (C + n_pad)),
        bytes_accessed=int(x_item * B * C * hw
                           + 4 * (2 * B * n_pad + B * 128
                                  + C * (2 * cr_pad + n_pad) + 2 * cr_pad + C + n_pad)),
    )

    x_block_bytes = tile_b * C * tile_hw * x_item
    vmem_limit_bytes = int(min(vmem_cap * 7 // 8,
                               max(vmem_limit, fixed + 2 * x_block_bytes + (4 << 20))))

    logits_p, loss_p = pl.pallas_call(
        kernel,
        grid=grid,
        in_specs=[
            pl.BlockSpec((tile_b, C, tile_hw), lambda b, h: (b, 0, h)),   # x
            pl.BlockSpec((tile_b, 1, n_pad), lambda b, h: (b, 0, 0)),     # targets
            const((C, cr_pad)),                                           # w1
            const((1, cr_pad)),                                           # b1
            const((cr_pad, C)),                                           # w2
            const((1, C)),                                                # b2
            const((C, n_pad)),                                            # wc
            const((1, n_pad)),                                            # bc
        ],
        out_specs=(
            pl.BlockSpec((tile_b, 1, n_pad), lambda b, h: (b, 0, 0)),     # logits (padded)
            pl.BlockSpec((tile_b, 1, 128), lambda b, h: (b, 0, 0)),       # per-sample loss
        ),
        out_shape=(
            jax.ShapeDtypeStruct((B, 1, n_pad), jnp.float32),
            jax.ShapeDtypeStruct((B, 1, 128), jnp.float32),
        ),
        scratch_shapes=[pltpu.VMEM((tile_b, C), jnp.float32)],            # pooled-sum acc
        compiler_params=pltpu.CompilerParams(
            dimension_semantics=("parallel", "arbitrary"),
            vmem_limit_bytes=vmem_limit_bytes),
        cost_estimate=cost,
    )(x_flat, t_p, w1_p, b1_p, w2_p, b2_p, wc_p, bc_p)

    outputs = logits_p[:, 0, :N]
    # mean over the batch kept as a tiny XLA epilogue so the kernel never
    # accumulates across the 'parallel' B axis (race-free on v7x megacore).
    loss = jnp.mean(loss_p[:, 0, 0]).reshape(1)
    return loss, outputs


def make_params(key, C, Cr, N):
    ks = jax.random.split(key, 6)
    w1 = jax.random.normal(ks[0], (C, Cr), jnp.float32) * 0.1
    b1 = jax.random.normal(ks[1], (1, Cr), jnp.float32) * 0.01
    w2 = jax.random.normal(ks[2], (Cr, C), jnp.float32) * 0.1
    b2 = jax.random.normal(ks[3], (1, C), jnp.float32) * 0.01
    wc = jax.random.normal(ks[4], (C, N), jnp.float32) * 0.1
    bc = jax.random.normal(ks[5], (1, N), jnp.float32) * 0.01
    return (w1, b1, w2, b2, wc, bc)


def reference_forward(targets, x, params):
    """Pure-JAX reference reproducing the same semantics."""
    w1, b1, w2, b2, wc, bc = params
    B, C, H, W = x.shape
    pooled = jnp.mean(x.reshape(B, C, H * W).astype(jnp.float32), axis=2)
    h = jnp.maximum(pooled @ w1 + b1, 0.0)
    s = jax.nn.sigmoid(h @ w2 + b2)
    logits = (pooled * s) @ wc + bc
    labels = jnp.argmax(targets, axis=1)
    logsm = jax.nn.log_softmax(logits, axis=1)
    loss = -jnp.mean(jnp.take_along_axis(logsm, labels[:, None], axis=1))
    return loss.reshape(1), logits


if __name__ == "__main__":
    key = jax.random.PRNGKey(0)
    k_x, k_t, k_p, k_x2, k_t2, k_p2 = jax.random.split(key, 6)

    # ---- case 1: canonical small shape; explicit tiles exercise the pipelined HW
    #      reduction (2 HW tiles) and the 'parallel' B axis (2 B blocks).
    B, C, H, W = 2, 4, 16, 16
    N_CLASSES, REDUCTION = 10, 2
    Cr = C // REDUCTION

    x = jax.random.normal(k_x, (B, C, H, W), jnp.float32)
    labels = jax.random.randint(k_t, (B,), 0, N_CLASSES)
    targets = jax.nn.one_hot(labels, N_CLASSES, dtype=jnp.float32)
    params = make_params(k_p, C, Cr, N_CLASSES)

    loss, outputs = full_model_forward(targets, x, params, tile_b=1, tile_hw=128)
    jax.block_until_ready((loss, outputs))
    ref_loss, ref_out = reference_forward(targets, x, params)
    assert loss.shape == (1,) and outputs.shape == (B, N_CLASSES)
    assert jnp.allclose(loss, ref_loss, atol=1e-5, rtol=1e-5)
    assert jnp.allclose(outputs, ref_out, atol=1e-5, rtol=1e-5)

    # ---- case 2: fully auto-tiled path (no x copy; single full-extent HW tile here)
    loss2, out2 = full_model_forward(targets, x, params)
    jax.block_until_ready((loss2, out2))
    assert jnp.allclose(loss2, ref_loss, atol=1e-5, rtol=1e-5)
    assert jnp.allclose(out2, ref_out, atol=1e-5, rtol=1e-5)

    # ---- case 3: bf16 activations (halves the dominant HBM read; f32 accumulation)
    x_bf = x.astype(jnp.bfloat16)
    loss3, out3 = full_model_forward(targets, x_bf, params, tile_b=1, tile_hw=128)
    jax.block_until_ready((loss3, out3))
    ref_loss3, ref_out3 = reference_forward(targets, x_bf.astype(jnp.float32), params)
    assert jnp.allclose(loss3, ref_loss3, atol=1e-4, rtol=1e-4)
    assert jnp.allclose(out3, ref_out3, atol=1e-4, rtol=1e-4)

    # ---- case 4: ragged shapes -> in-kernel masking of the HW tail + ragged B block
    B2, C2, H2, W2, N2 = 3, 8, 20, 20, 7
    x2 = jax.random.normal(k_x2, (B2, C2, H2, W2), jnp.float32)
    labels2 = jax.random.randint(k_t2, (B2,), 0, N2)
    targets2 = jax.nn.one_hot(labels2, N2, dtype=jnp.float32)
    params2 = make_params(k_p2, C2, C2 // 2, N2)
    loss4, out4 = full_model_forward(targets2, x2, params2, tile_b=2, tile_hw=128)
    jax.block_until_ready((loss4, out4))
    ref_loss4, ref_out4 = reference_forward(targets2, x2, params2)
    assert jnp.allclose(loss4, ref_loss4, atol=1e-5, rtol=1e-5)
    assert jnp.allclose(out4, ref_out4, atol=1e-5, rtol=1e-5)

    print("KERNEL_OK")
</pallas_src>

<mosaic_0001>
module attributes {stable_mosaic.version = 11 : i64} {
  func.func @fullmodel_kernel(%arg0: i32, %arg1: i32, %arg2: memref<1x4x128xf32, #tpu.memory_space<vmem>>, %arg3: memref<1x1x128xf32, #tpu.memory_space<vmem>>, %arg4: memref<4x128xf32, #tpu.memory_space<vmem>>, %arg5: memref<1x128xf32, #tpu.memory_space<vmem>>, %arg6: memref<128x4xf32, #tpu.memory_space<vmem>>, %arg7: memref<1x4xf32, #tpu.memory_space<vmem>>, %arg8: memref<4x128xf32, #tpu.memory_space<vmem>>, %arg9: memref<1x128xf32, #tpu.memory_space<vmem>>, %arg10: memref<1x1x128xf32, #tpu.memory_space<vmem>>, %arg11: memref<1x1x128xf32, #tpu.memory_space<vmem>>, %arg12: memref<1x4xf32, #tpu.memory_space<vmem>>) attributes {dimension_semantics = [#tpu.dimension_semantics<parallel>, #tpu.dimension_semantics<arbitrary>], iteration_bounds = array<i64: 2, 2>, scalar_prefetch = 0 : i64, scratch_operands = 1 : i64, tpu.core_type = #tpu.core_type<tc>, window_params = [{transform_indices = @transform_0, window_bounds = array<i64: 1, 4, 128>}, {transform_indices = @transform_1, window_bounds = array<i64: 1, 1, 128>}, {pipeline_mode = #tpu.pipeline_mode<synchronous>, transform_indices = @transform_2, window_bounds = array<i64: 4, 128>}, {pipeline_mode = #tpu.pipeline_mode<synchronous>, transform_indices = @transform_3, window_bounds = array<i64: 1, 128>}, {pipeline_mode = #tpu.pipeline_mode<synchronous>, transform_indices = @transform_4, window_bounds = array<i64: 128, 4>}, {pipeline_mode = #tpu.pipeline_mode<synchronous>, transform_indices = @transform_5, window_bounds = array<i64: 1, 4>}, {pipeline_mode = #tpu.pipeline_mode<synchronous>, transform_indices = @transform_6, window_bounds = array<i64: 4, 128>}, {pipeline_mode = #tpu.pipeline_mode<synchronous>, transform_indices = @transform_7, window_bounds = array<i64: 1, 128>}, {transform_indices = @transform_8, window_bounds = array<i64: 1, 1, 128>}, {transform_indices = @transform_9, window_bounds = array<i64: 1, 1, 128>}]} {
    %c0_i32 = arith.constant 0 : i32
    %0 = arith.cmpi eq, %arg1, %c0_i32 : i32
    %1 = arith.extui %0 : i1 to i32
    %c0_i32_0 = arith.constant 0 : i32
    %2 = arith.cmpi ne, %1, %c0_i32_0 : i32
    scf.if %2 {
      %cst_8 = arith.constant 0.000000e+00 : f32
      %11 = vector.broadcast %cst_8 : f32 to vector<1x4xf32>
      %c0_9 = arith.constant 0 : index
      %c0_10 = arith.constant 0 : index
      %12 = vector.load %arg12[%c0_9, %c0_10] : memref<1x4xf32, #tpu.memory_space<vmem>>, vector<1x4xf32>
      tpu.vector_store %arg12[%c0_9, %c0_10], %11 {strides = array<i32>} : memref<1x4xf32, #tpu.memory_space<vmem>>, vector<1x4xf32>,
    } else {
    }
    %c0 = arith.constant 0 : index
    %c0_1 = arith.constant 0 : index
    %c0_2 = arith.constant 0 : index
    %3 = vector.load %arg2[%c0, %c0_1, %c0_2] : memref<1x4x128xf32, #tpu.memory_space<vmem>>, vector<1x4x128xf32>
    %c0_3 = arith.constant 0 : index
    %c0_4 = arith.constant 0 : index
    %4 = vector.load %arg12[%c0_3, %c0_4] : memref<1x4xf32, #tpu.memory_space<vmem>>, vector<1x4xf32>
    %cst = arith.constant dense<0.000000e+00> : vector<1x4xf32>
    %5 = vector.multi_reduction <add>, %3, %cst [2] : vector<1x4x128xf32> to vector<1x4xf32>
    %6 = arith.addf %4, %5 : vector<1x4xf32>
    %c0_5 = arith.constant 0 : index
    %c0_6 = arith.constant 0 : index
    %7 = vector.load %arg12[%c0_5, %c0_6] : memref<1x4xf32, #tpu.memory_space<vmem>>, vector<1x4xf32>
    tpu.vector_store %arg12[%c0_5, %c0_6], %6 {strides = array<i32>} : memref<1x4xf32, #tpu.memory_space<vmem>>, vector<1x4xf32>,
    %c1_i32 = arith.constant 1 : i32
    %8 = arith.cmpi eq, %arg1, %c1_i32 : i32
    %9 = arith.extui %8 : i1 to i32
    %c0_i32_7 = arith.constant 0 : i32
    %10 = arith.cmpi ne, %9, %c0_i32_7 : i32
    scf.if %10 {
      %c0_8 = arith.constant 0 : index
      %c0_9 = arith.constant 0 : index
      %11 = vector.load %arg12[%c0_8, %c0_9] : memref<1x4xf32, #tpu.memory_space<vmem>>, vector<1x4xf32>
      %cst_10 = arith.constant 3.906250e-03 : f32
      %12 = vector.broadcast %cst_10 : f32 to vector<1x4xf32>
      %13 = arith.mulf %11, %12 : vector<1x4xf32>
      %c0_11 = arith.constant 0 : index
      %c0_12 = arith.constant 0 : index
      %14 = vector.load %arg4[%c0_11, %c0_12] : memref<4x128xf32, #tpu.memory_space<vmem>>, vector<4x128xf32>
      %cst_13 = arith.constant dense<0.000000e+00> : vector<1x128xf32>
      %15 = tpu.matmul %13, %14, %cst_13 {dimension_numbers = #tpu.dot_dimension_numbers<[1], [0], [0], [1], [0, 0, 1, 1], [], []>} : vector<1x4xf32>, vector<4x128xf32>, vector<1x128xf32> -> vector<1x128xf32>
      %c0_14 = arith.constant 0 : index
      %c0_15 = arith.constant 0 : index
      %16 = vector.load %arg5[%c0_14, %c0_15] : memref<1x128xf32, #tpu.memory_space<vmem>>, vector<1x128xf32>
      %17 = arith.addf %15, %16 : vector<1x128xf32>
      %cst_16 = arith.constant 0.000000e+00 : f32
      %18 = vector.broadcast %cst_16 : f32 to vector<1x128xf32>
      %19 = arith.maximumf %17, %18 : vector<1x128xf32>
      %c0_17 = arith.constant 0 : index
      %c0_18 = arith.constant 0 : index
      %20 = vector.load %arg6[%c0_17, %c0_18] : memref<128x4xf32, #tpu.memory_space<vmem>>, vector<128x4xf32>
      %cst_19 = arith.constant dense<0.000000e+00> : vector<1x4xf32>
      %21 = tpu.matmul %19, %20, %cst_19 {dimension_numbers = #tpu.dot_dimension_numbers<[1], [0], [0], [1], [0, 0, 1, 1], [], []>} : vector<1x128xf32>, vector<128x4xf32>, vector<1x4xf32> -> vector<1x4xf32>
      %c0_20 = arith.constant 0 : index
      %c0_21 = arith.constant 0 : index
      %22 = vector.load %arg7[%c0_20, %c0_21] : memref<1x4xf32, #tpu.memory_space<vmem>>, vector<1x4xf32>
      %23 = arith.addf %21, %22 : vector<1x4xf32>
      %24 = arith.negf %23 : vector<1x4xf32>
      %25 = math.exp %24 : vector<1x4xf32>
      %cst_22 = arith.constant 1.000000e+00 : f32
      %26 = vector.broadcast %cst_22 : f32 to vector<1x4xf32>
      %27 = arith.addf %26, %25 : vector<1x4xf32>
      %28 = arith.divf %26, %27 : vector<1x4xf32>
      %29 = arith.mulf %13, %28 : vector<1x4xf32>
      %c0_23 = arith.constant 0 : index
      %c0_24 = arith.constant 0 : index
      %30 = vector.load %arg8[%c0_23, %c0_24] : memref<4x128xf32, #tpu.memory_space<vmem>>, vector<4x128xf32>
      %cst_25 = arith.constant dense<0.000000e+00> : vector<1x128xf32>
      %31 = tpu.matmul %29, %30, %cst_25 {dimension_numbers = #tpu.dot_dimension_numbers<[1], [0], [0], [1], [0, 0, 1, 1], [], []>} : vector<1x4xf32>, vector<4x128xf32>, vector<1x128xf32> -> vector<1x128xf32>
      %c0_26 = arith.constant 0 : index
      %c0_27 = arith.constant 0 : index
      %32 = vector.load %arg9[%c0_26, %c0_27] : memref<1x128xf32, #tpu.memory_space<vmem>>, vector<1x128xf32>
      %33 = arith.addf %31, %32 : vector<1x128xf32>
      %34 = vector.shape_cast %33 : vector<1x128xf32> to vector<1x1x128xf32>
      %c0_28 = arith.constant 0 : index
      %c0_29 = arith.constant 0 : index
      %c0_30 = arith.constant 0 : index
      %35 = vector.load %arg10[%c0_28, %c0_29, %c0_30] : memref<1x1x128xf32, #tpu.memory_space<vmem>>, vector<1x1x128xf32>
      tpu.vector_store %arg10[%c0_28, %c0_29, %c0_30], %34 {strides = array<i32>} : memref<1x1x128xf32, #tpu.memory_space<vmem>>, vector<1x1x128xf32>,
      %c0_31 = arith.constant 0 : index
      %c0_32 = arith.constant 0 : index
      %c0_33 = arith.constant 0 : index
      %36 = vector.load %arg3[%c0_31, %c0_32, %c0_33] : memref<1x1x128xf32, #tpu.memory_space<vmem>>, vector<1x1x128xf32>
      %37 = vector.shape_cast %36 : vector<1x1x128xf32> to vector<1x128xf32>
      %38 = tpu.iota {dimensions = array<i32: 1>} : vector<1x128xi32>
      %c10_i32 = arith.constant 10 : i32
      %39 = vector.broadcast %c10_i32 : i32 to vector<1x128xi32>
      %40 = arith.cmpi slt, %38, %39 : vector<1x128xi32>
      %cst_34 = arith.constant -3.40282347E+38 : f32
      %41 = vector.broadcast %cst_34 : f32 to vector<1x128xf32>
      %42 = arith.select %40, %37, %41 : vector<1x128xi1>, vector<1x128xf32>
      %cst_35 = arith.constant dense<0xFF800000> : vector<1xf32>
      %43 = vector.multi_reduction <maximumf>, %42, %cst_35 [1] : vector<1x128xf32> to vector<1xf32>
      %44 = vector.shape_cast %43 : vector<1xf32> to vector<1x1xf32>
      %45 = vector.broadcast %44 : vector<1x1xf32> to vector<1x128xf32>
      %46 = arith.cmpf oeq, %42, %45 : vector<1x128xf32>
      %c128_i32 = arith.constant 128 : i32
      %47 = vector.broadcast %c128_i32 : i32 to vector<1x128xi32>
      %48 = arith.select %46, %38, %47 : vector<1x128xi1>, vector<1x128xi32>
      %cst_36 = arith.constant dense<2147483647> : vector<1xi32>
      %49 = vector.multi_reduction <minsi>, %48, %cst_36 [1] : vector<1x128xi32> to vector<1xi32>
      %50 = vector.shape_cast %49 : vector<1xi32> to vector<1x1xi32>
      %51 = vector.broadcast %50 : vector<1x1xi32> to vector<1x128xi32>
      %52 = arith.cmpi eq, %38, %51 : vector<1x128xi32>
      %53 = arith.extui %52 : vector<1x128xi1> to vector<1x128xi32>
      %54 = arith.sitofp %53 : vector<1x128xi32> to vector<1x128xf32>
      %cst_37 = arith.constant -3.40282347E+38 : f32
      %55 = vector.broadcast %cst_37 : f32 to vector<1x128xf32>
      %56 = arith.select %40, %33, %55 : vector<1x128xi1>, vector<1x128xf32>
      %cst_38 = arith.constant dense<0xFF800000> : vector<1xf32>
      %57 = vector.multi_reduction <maximumf>, %56, %cst_38 [1] : vector<1x128xf32> to vector<1xf32>
      %58 = vector.shape_cast %57 : vector<1xf32> to vector<1x1xf32>
      %59 = vector.broadcast %58 : vector<1x1xf32> to vector<1x128xf32>
      %60 = arith.subf %56, %59 : vector<1x128xf32>
      %61 = math.exp %60 : vector<1x128xf32>
      %cst_39 = arith.constant dense<0.000000e+00> : vector<1xf32>
      %62 = vector.multi_reduction <add>, %61, %cst_39 [1] : vector<1x128xf32> to vector<1xf32>
      %63 = vector.shape_cast %62 : vector<1xf32> to vector<1x1xf32>
      %64 = math.log %63 : vector<1x1xf32>
      %65 = arith.addf %64, %58 : vector<1x1xf32>
      %66 = vector.broadcast %65 : vector<1x1xf32> to vector<1x128xf32>
      %67 = arith.subf %66, %33 : vector<1x128xf32>
      %68 = arith.mulf %54, %67 : vector<1x128xf32>
      %cst_40 = arith.constant dense<0.000000e+00> : vector<1xf32>
      %69 = vector.multi_reduction <add>, %68, %cst_40 [1] : vector<1x128xf32> to vector<1xf32>
      %70 = vector.shape_cast %69 : vector<1xf32> to vector<1x1xf32>
      %71 = vector.shape_cast %70 : vector<1x1xf32> to vector<1x1x1xf32>
      %72 = vector.shape_cast %71 : vector<1x1x1xf32> to vector<1x1x1xf32>
      %73 = vector.broadcast %72 : vector<1x1x1xf32> to vector<1x1x128xf32>
      %c0_41 = arith.constant 0 : index
      %c0_42 = arith.constant 0 : index
      %c0_43 = arith.constant 0 : index
      %74 = vector.load %arg11[%c0_41, %c0_42, %c0_43] : memref<1x1x128xf32, #tpu.memory_space<vmem>>, vector<1x1x128xf32>
      tpu.vector_store %arg11[%c0_41, %c0_42, %c0_43], %73 {strides = array<i32>} : memref<1x1x128xf32, #tpu.memory_space<vmem>>, vector<1x1x128xf32>,
    } else {
    }
    return
  }
  func.func @transform_0(%arg0: i32, %arg1: i32) -> (i32, i32, i32) {
    %c0_i32 = arith.constant 0 : i32
    %c0_i32_0 = arith.constant 0 : i32
    return %arg0, %c0_i32, %arg1 : i32, i32, i32
  }
  func.func @transform_1(%arg0: i32, %arg1: i32) -> (i32, i32, i32) {
    %c0_i32 = arith.constant 0 : i32
    %c0_i32_0 = arith.constant 0 : i32
    %c0_i32_1 = arith.constant 0 : i32
    return %arg0, %c0_i32, %c0_i32_0 : i32, i32, i32
  }
  func.func @transform_2(%arg0: i32, %arg1: i32) -> (i32, i32) {
    %c0_i32 = arith.constant 0 : i32
    %c0_i32_0 = arith.constant 0 : i32
    %c0_i32_1 = arith.constant 0 : i32
    return %c0_i32, %c0_i32_0 : i32, i32
  }
  func.func @transform_3(%arg0: i32, %arg1: i32) -> (i32, i32) {
    %c0_i32 = arith.constant 0 : i32
    %c0_i32_0 = arith.constant 0 : i32
    %c0_i32_1 = arith.constant 0 : i32
    return %c0_i32, %c0_i32_0 : i32, i32
  }
  func.func @transform_4(%arg0: i32, %arg1: i32) -> (i32, i32) {
    %c0_i32 = arith.constant 0 : i32
    %c0_i32_0 = arith.constant 0 : i32
    %c0_i32_1 = arith.constant 0 : i32
    return %c0_i32, %c0_i32_0 : i32, i32
  }
  func.func @transform_5(%arg0: i32, %arg1: i32) -> (i32, i32) {
    %c0_i32 = arith.constant 0 : i32
    %c0_i32_0 = arith.constant 0 : i32
    %c0_i32_1 = arith.constant 0 : i32
    return %c0_i32, %c0_i32_0 : i32, i32
  }
  func.func @transform_6(%arg0: i32, %arg1: i32) -> (i32, i32) {
    %c0_i32 = arith.constant 0 : i32
    %c0_i32_0 = arith.constant 0 : i32
    %c0_i32_1 = arith.constant 0 : i32
    return %c0_i32, %c0_i32_0 : i32, i32
  }
  func.func @transform_7(%arg0: i32, %arg1: i32) -> (i32, i32) {
    %c0_i32 = arith.constant 0 : i32
    %c0_i32_0 = arith.constant 0 : i32
    %c0_i32_1 = arith.constant 0 : i32
    return %c0_i32, %c0_i32_0 : i32, i32
  }
  func.func @transform_8(%arg0: i32, %arg1: i32) -> (i32, i32, i32) {
    %c0_i32 = arith.constant 0 : i32
    %c0_i32_0 = arith.constant 0 : i32
    %c0_i32_1 = arith.constant 0 : i32
    return %arg0, %c0_i32, %c0_i32_0 : i32, i32, i32
  }
  func.func @transform_9(%arg0: i32, %arg1: i32) -> (i32, i32, i32) {
    %c0_i32 = arith.constant 0 : i32
    %c0_i32_0 = arith.constant 0 : i32
    %c0_i32_1 = arith.constant 0 : i32
    return %arg0, %c0_i32, %c0_i32_0 : i32, i32, i32
  }
}

</mosaic_0001>

<llo_original>
// kernel: tpu_custom_call.1
$region0: #{tpu_custom_call.1}
  #allocation0 [shape = 'u32[]', space=smem, size = 0x4, offset = 0x4, fixed_abs, tag = 'smem constant byte address 0x4 - core index']
  #allocation1 [shape = 'u32[144,128]{1,0:T(1,128)}', space=vmem, size = 0x12000, scoped, tag = 'internal scratch']
  #allocation2 [shape = 'f32[1,4]{1,0:T(1,128)}', space=vmem, size = 0x200, scoped, tag = 'scratch operand']
  %s0 = inlined_call_operand.vmem [shape: f32[2,4,256], index: 0, kind: input, shape index: {}]
  %s1 = inlined_call_operand.vmem [shape: f32[2,1,128], index: 1, kind: input, shape index: {}]
  %s2 = inlined_call_operand.vmem [shape: f32[4,128], index: 2, kind: input, shape index: {}]
  %s3 = inlined_call_operand.vmem [shape: f32[1,128], index: 3, kind: input, shape index: {}]
  %s4 = inlined_call_operand.vmem [shape: f32[128,4], index: 4, kind: input, shape index: {}]
  %s5 = inlined_call_operand.vmem [shape: f32[1,4], index: 5, kind: input, shape index: {}]
  %s6 = inlined_call_operand.vmem [shape: f32[4,128], index: 6, kind: input, shape index: {}]
  %s7 = inlined_call_operand.vmem [shape: f32[1,128], index: 7, kind: input, shape index: {}]
  %s8 = inlined_call_operand.hbm [shape: f32[2,1,128], index: 8, kind: output, shape index: {0}]
  %s9 = inlined_call_operand.hbm [shape: f32[2,1,128], index: 9, kind: output, shape index: {1}]
  %10 = xla_tuple %s8, %s9
  %s11 = sld [smem:[#allocation0]]
  $region81: #{tpu_custom_call.1} parent=0
    _
  %s13 = ssub.s32 1, %s11
  %s14 = scalar_select 0, %s13, %s11
  $region1: #{tpu_custom_call.1} parent=0
    #allocation3 [shape = 'u8[1024]{0}', space=vmem, size = 0x400, scoped, tag = 'output window, operand 0']
    #allocation4 [shape = 's32[2]{0}', space=sflag, size = 0x8, scoped, tag = 'scoped memory for tpu_custom_call.1']
    #allocation5 [shape = 'u8[1024]{0}', space=vmem, size = 0x400, scoped, tag = 'output window, operand 1']
    #allocation6 [shape = 's32[2]{0}', space=sflag, size = 0x8, scoped, tag = 'scoped memory for tpu_custom_call.1']
    %15 = vsyncpa [#allocation4], 0
    %s16 = scalar_lea.sflag [#allocation4], 1
    %17 = vsyncpa %s16, 0
    %18 = vsyncpa [#allocation6], 0
    %s19 = scalar_lea.sflag [#allocation6], 1
    %20 = vsyncpa %s19, 0
    loop: start=0, step=1, limit=6
    $region2: #{tpu_custom_call.1} parent=1 // loop_pre_header
      _
    $region3: #{tpu_custom_call.1} parent=1 // loop_header
      %s22 = sphi 0, %s26
      %p23 = scmp.ge.s32.totalorder %s22, 6
      %s29 = sphi 0, %s41
      %s30 = sphi 0, %s37
      %s31 = sphi 0, %s29
      %s32 = sphi 0, %s30
      %s33 = sphi 0, %s31
      %s34 = sphi 0, %s32
      %s46 = sphi 0, %s48
      %s49 = sphi 0, %s46
      %s50 = sphi 0, %s49
      %s66 = sphi 0, %s50
      %s72 = sphi 0, %s74
      %s75 = sphi 0, %s72
      %s76 = sphi 0, %s75
      %s92 = sphi 0, %s76
      %s96 = sphi 0, %s96
      %s98 = sphi 0, %s96
      %s99 = sphi 0, %s98
      %s113 = sphi 0, %s99
      %s117 = sphi 0, %s117
      %s119 = sphi 0, %s117
      %s120 = sphi 0, %s119
      %s134 = sphi 0, %s120
      %s138 = sphi 0, %s138
      %s140 = sphi 0, %s138
      %s141 = sphi 0, %s140
      %s155 = sphi 0, %s141
      %s159 = sphi 0, %s159
      %s161 = sphi 0, %s159
      %s162 = sphi 0, %s161
      %s176 = sphi 0, %s162
      %s180 = sphi 0, %s180
      %s182 = sphi 0, %s180
      %s183 = sphi 0, %s182
      %s197 = sphi 0, %s183
      %s201 = sphi 0, %s201
      %s203 = sphi 0, %s201
      %s204 = sphi 0, %s203
      %s218 = sphi 0, %s204
      %s224 = sphi 0, %s226
      %s227 = sphi 0, %s224
      %s228 = sphi 0, %s227
      %s244 = sphi 0, %s228
      %s250 = sphi 0, %s252
      %s253 = sphi 0, %s250
      %s254 = sphi 0, %s253
      %s270 = sphi 0, %s254
    $region4: #{tpu_custom_call.1} parent=1 // loop_header_branch
      %25 = sbr.rel (%p23) target = $region8
    $region5: #{tpu_custom_call.1} parent=1 // loop_body
      %s27 = ssub.s32 %s22, 1
      %s28 = ssub.s32 %s22, 2
      %s35 = sadd.s32 1, %s30
      %p36 = scmp.ge.s32.totalorder %s35, 2
      %s37 = scalar_select %p36, 0, %s35
      %s38 = sadd.s32 1, %s29
      %s39 = scalar_select %p36, %s38, %s29
      %p40 = scmp.ge.s32.totalorder %s39, 2
      %s41 = scalar_select %p40, 0, %s39
      %s42 = ssub.s32 %s29, %s41
      %s43 = ssub.s32 %s30, %s37
      %s44 = sor.u32 %s42, %s43
      %p45 = scmp.eq.s32.totalorder %s44, 0
      %s47 = sadd.s32 %s46, 1
      %s48 = scalar_select %p45, %s46, %s47
      %p51 = pneg %p45
      %p52 = scmp.eq.s32.totalorder %s22, 3
      %p53 = por %p51, %p52
      %p54 = scmp.ne.s32.totalorder %s46, %s49
      %p55 = scmp.eq.s32.totalorder %s22, 0
      %p56 = por %p54, %p55
      %p57 = scmp.ne.s32.totalorder %s46, %s49
      %p58 = scmp.eq.s32.totalorder %s27, 3
      %p59 = por %p57, %p58
      %p60 = scmp.ne.s32.totalorder %s49, %s50
      %p61 = scmp.eq.s32.totalorder %s27, 0
      %p62 = por %p60, %p61
      %p63 = scmp.ne.s32.totalorder %s49, %s50
      %p64 = scmp.eq.s32.totalorder %s28, 3
      %p65 = por %p63, %p64
      %p67 = scmp.ne.s32.totalorder %s50, %s66
      %p68 = scmp.eq.s32.totalorder %s28, 0
      %p69 = por %p67, %p68
      %s70 = ssub.s32 %s29, %s41
      %p71 = scmp.eq.s32.totalorder %s70, 0
      %s73 = sadd.s32 %s72, 1
      %s74 = scalar_select %p71, %s72, %s73
      %p77 = pneg %p71
      %p78 = scmp.eq.s32.totalorder %s22, 3
      %p79 = por %p77, %p78
      %p80 = scmp.ne.s32.totalorder %s72, %s75
      %p81 = scmp.eq.s32.totalorder %s22, 0
      %p82 = por %p80, %p81
      %p83 = scmp.ne.s32.totalorder %s72, %s75
      %p84 = scmp.eq.s32.totalorder %s27, 3
      %p85 = por %p83, %p84
      %p86 = scmp.ne.s32.totalorder %s75, %s76
      %p87 = scmp.eq.s32.totalorder %s27, 0
      %p88 = por %p86, %p87
      %p89 = scmp.ne.s32.totalorder %s75, %s76
      %p90 = scmp.eq.s32.totalorder %s28, 3
      %p91 = por %p89, %p90
      %p93 = scmp.ne.s32.totalorder %s76, %s92
      %p94 = scmp.eq.s32.totalorder %s28, 0
      %p95 = por %p93, %p94
      %s97 = sadd.s32 %s96, 1
      %p100 = scmp.eq.s32.totalorder %s22, 3
      %p101 = scmp.ne.s32.totalorder %s96, %s98
      %p102 = scmp.eq.s32.totalorder %s22, 0
      %p103 = por %p101, %p102
      %p104 = scmp.ne.s32.totalorder %s96, %s98
      %p105 = scmp.eq.s32.totalorder %s27, 3
      %p106 = por %p104, %p105
      %p107 = scmp.ne.s32.totalorder %s98, %s99
      %p108 = scmp.eq.s32.totalorder %s27, 0
      %p109 = por %p107, %p108
      %p110 = scmp.ne.s32.totalorder %s98, %s99
      %p111 = scmp.eq.s32.totalorder %s28, 3
      %p112 = por %p110, %p111
      %p114 = scmp.ne.s32.totalorder %s99, %s113
      %p115 = scmp.eq.s32.totalorder %s28, 0
      %p116 = por %p114, %p115
      %s118 = sadd.s32 %s117, 1
      %p121 = scmp.eq.s32.totalorder %s22, 3
      %p122 = scmp.ne.s32.totalorder %s117, %s119
      %p123 = scmp.eq.s32.totalorder %s22, 0
      %p124 = por %p122, %p123
      %p125 = scmp.ne.s32.totalorder %s117, %s119
      %p126 = scmp.eq.s32.totalorder %s27, 3
      %p127 = por %p125, %p126
      %p128 = scmp.ne.s32.totalorder %s119, %s120
      %p129 = scmp.eq.s32.totalorder %s27, 0
      %p130 = por %p128, %p129
      %p131 = scmp.ne.s32.totalorder %s119, %s120
      %p132 = scmp.eq.s32.totalorder %s28, 3
      %p133 = por %p131, %p132
      %p135 = scmp.ne.s32.totalorder %s120, %s134
      %p136 = scmp.eq.s32.totalorder %s28, 0
      %p137 = por %p135, %p136
      %s139 = sadd.s32 %s138, 1
      %p142 = scmp.eq.s32.totalorder %s22, 3
      %p143 = scmp.ne.s32.totalorder %s138, %s140
      %p144 = scmp.eq.s32.totalorder %s22, 0
      %p145 = por %p143, %p144
      %p146 = scmp.ne.s32.totalorder %s138, %s140
      %p147 = scmp.eq.s32.totalorder %s27, 3
      %p148 = por %p146, %p147
      %p149 = scmp.ne.s32.totalorder %s140, %s141
      %p150 = scmp.eq.s32.totalorder %s27, 0
      %p151 = por %p149, %p150
      %p152 = scmp.ne.s32.totalorder %s140, %s141
      %p153 = scmp.eq.s32.totalorder %s28, 3
      %p154 = por %p152, %p153
      %p156 = scmp.ne.s32.totalorder %s141, %s155
      %p157 = scmp.eq.s32.totalorder %s28, 0
      %p158 = por %p156, %p157
      %s160 = sadd.s32 %s159, 1
      %p163 = scmp.eq.s32.totalorder %s22, 3
      %p164 = scmp.ne.s32.totalorder %s159, %s161
      %p165 = scmp.eq.s32.totalorder %s22, 0
      %p166 = por %p164, %p165
      %p167 = scmp.ne.s32.totalorder %s159, %s161
      %p168 = scmp.eq.s32.totalorder %s27, 3
      %p169 = por %p167, %p168
      %p170 = scmp.ne.s32.totalorder %s161, %s162
      %p171 = scmp.eq.s32.totalorder %s27, 0
      %p172 = por %p170, %p171
      %p173 = scmp.ne.s32.totalorder %s161, %s162
      %p174 = scmp.eq.s32.totalorder %s28, 3
      %p175 = por %p173, %p174
      %p177 = scmp.ne.s32.totalorder %s162, %s176
      %p178 = scmp.eq.s32.totalorder %s28, 0
      %p179 = por %p177, %p178
      %s181 = sadd.s32 %s180, 1
      %p184 = scmp.eq.s32.totalorder %s22, 3
      %p185 = scmp.ne.s32.totalorder %s180, %s182
      %p186 = scmp.eq.s32.totalorder %s22, 0
      %p187 = por %p185, %p186
      %p188 = scmp.ne.s32.totalorder %s180, %s182
      %p189 = scmp.eq.s32.totalorder %s27, 3
      %p190 = por %p188, %p189
      %p191 = scmp.ne.s32.totalorder %s182, %s183
      %p192 = scmp.eq.s32.totalorder %s27, 0
      %p193 = por %p191, %p192
      %p194 = scmp.ne.s32.totalorder %s182, %s183
      %p195 = scmp.eq.s32.totalorder %s28, 3
      %p196 = por %p194, %p195
      %p198 = scmp.ne.s32.totalorder %s183, %s197
      %p199 = scmp.eq.s32.totalorder %s28, 0
      %p200 = por %p198, %p199
      %s202 = sadd.s32 %s201, 1
      %p205 = scmp.eq.s32.totalorder %s22, 3
      %p206 = scmp.ne.s32.totalorder %s201, %s203
      %p207 = scmp.eq.s32.totalorder %s22, 0
      %p208 = por %p206, %p207
      %p209 = scmp.ne.s32.totalorder %s201, %s203
      %p210 = scmp.eq.s32.totalorder %s27, 3
      %p211 = por %p209, %p210
      %p212 = scmp.ne.s32.totalorder %s203, %s204
      %p213 = scmp.eq.s32.totalorder %s27, 0
      %p214 = por %p212, %p213
      %p215 = scmp.ne.s32.totalorder %s203, %s204
      %p216 = scmp.eq.s32.totalorder %s28, 3
      %p217 = por %p215, %p216
      %p219 = scmp.ne.s32.totalorder %s204, %s218
      %p220 = scmp.eq.s32.totalorder %s28, 0
      %p221 = por %p219, %p220
      %s222 = ssub.s32 %s29, %s41
      %p223 = scmp.eq.s32.totalorder %s222, 0
      %s225 = sadd.s32 %s224, 1
      %s226 = scalar_select %p223, %s224, %s225
      %p229 = pneg %p223
      %p230 = scmp.eq.s32.totalorder %s22, 3
      %p231 = por %p229, %p230
      %p232 = scmp.ne.s32.totalorder %s224, %s227
      %p233 = scmp.eq.s32.totalorder %s22, 0
      %p234 = por %p232, %p233
      %p235 = scmp.ne.s32.totalorder %s224, %s227
      %p236 = scmp.eq.s32.totalorder %s27, 3
      %p237 = por %p235, %p236
      %p238 = scmp.ne.s32.totalorder %s227, %s228
      %p239 = scmp.eq.s32.totalorder %s27, 0
      %p240 = por %p238, %p239
      %p241 = scmp.ne.s32.totalorder %s227, %s228
      %p242 = scmp.eq.s32.totalorder %s28, 3
      %p243 = por %p241, %p242
      %p245 = scmp.ne.s32.totalorder %s228, %s244
      %p246 = scmp.eq.s32.totalorder %s28, 0
      %p247 = por %p245, %p246
      %s248 = ssub.s32 %s29, %s41
      %p249 = scmp.eq.s32.totalorder %s248, 0
      %s251 = sadd.s32 %s250, 1
      %s252 = scalar_select %p249, %s250, %s251
      %p255 = pneg %p249
      %p256 = scmp.eq.s32.totalorder %s22, 3
      %p257 = por %p255, %p256
      %p258 = scmp.ne.s32.totalorder %s250, %s253
      %p259 = scmp.eq.s32.totalorder %s22, 0
      %p260 = por %p258, %p259
      %p261 = scmp.ne.s32.totalorder %s250, %s253
      %p262 = scmp.eq.s32.totalorder %s27, 3
      %p263 = por %p261, %p262
      %p264 = scmp.ne.s32.totalorder %s253, %s254
      %p265 = scmp.eq.s32.totalorder %s27, 0
      %p266 = por %p264, %p265
      %p267 = scmp.ne.s32.totalorder %s253, %s254
      %p268 = scmp.eq.s32.totalorder %s28, 3
      %p269 = por %p267, %p268
      %p271 = scmp.ne.s32.totalorder %s254, %s270
      %p272 = scmp.eq.s32.totalorder %s28, 0
      %p273 = por %p271, %p272
      %p274 = scmp.le.s32.totalorder 1, %s22
      %p275 = scmp.lt.s32.totalorder %s22, 5
      %p276 = pnand %p274, %p275
      %p277 = pneg %p276
      // Predicated region
      $region9: #{tpu_custom_call.1} parent=5 // pred_check
        _
      $region10: #{tpu_custom_call.1} parent=5 // pred_check_branch
        %279 = sbr.rel (%p276) target = $region12
      $region11: #{tpu_custom_call.1} parent=5 // pred_region
        %s280 = ssub.s32 %s22, 1
        // Predicated region
        $region13: #{tpu_custom_call.1} parent=11 // pred_check
          %p281 = pneg %p109
        $region14: #{tpu_custom_call.1} parent=11 // pred_check_branch
          %283 = sbr.rel (%p281) target = $region16
        $region15: #{tpu_custom_call.1} parent=11 // pred_region
          _
        $region16: #{tpu_custom_call.1} parent=11 // pred_fallthru
          _
        // Predicated region
        $region17: #{tpu_custom_call.1} parent=11 // pred_check
          %p284 = pneg %p130
        $region18: #{tpu_custom_call.1} parent=11 // pred_check_branch
          %286 = sbr.rel (%p284) target = $region20
        $region19: #{tpu_custom_call.1} parent=11 // pred_region
          _
        $region20: #{tpu_custom_call.1} parent=11 // pred_fallthru
          _
        // Predicated region
        $region21: #{tpu_custom_call.1} parent=11 // pred_check
          %p287 = pneg %p151
        $region22: #{tpu_custom_call.1} parent=11 // pred_check_branch
          %289 = sbr.rel (%p287) target = $region24
        $region23: #{tpu_custom_call.1} parent=11 // pred_region
          _
        $region24: #{tpu_custom_call.1} parent=11 // pred_fallthru
          _
        // Predicated region
        $region25: #{tpu_custom_call.1} parent=11 // pred_check
          %p290 = pneg %p172
        $region26: #{tpu_custom_call.1} parent=11 // pred_check_branch
          %292 = sbr.rel (%p290) target = $region28
        $region27: #{tpu_custom_call.1} parent=11 // pred_region
          _
        $region28: #{tpu_custom_call.1} parent=11 // pred_fallthru
          _
        // Predicated region
        $region29: #{tpu_custom_call.1} parent=11 // pred_check
          %p293 = pneg %p193
        $region30: #{tpu_custom_call.1} parent=11 // pred_check_branch
          %295 = sbr.rel (%p293) target = $region32
        $region31: #{tpu_custom_call.1} parent=11 // pred_region
          _
        $region32: #{tpu_custom_call.1} parent=11 // pred_fallthru
          _
        // Predicated region
        $region33: #{tpu_custom_call.1} parent=11 // pred_check
          %p296 = pneg %p214
        $region34: #{tpu_custom_call.1} parent=11 // pred_check_branch
          %298 = sbr.rel (%p296) target = $region36
        $region35: #{tpu_custom_call.1} parent=11 // pred_region
          _
        $region36: #{tpu_custom_call.1} parent=11 // pred_fallthru
          _
      $region12: #{tpu_custom_call.1} parent=5 // pred_fallthru
        _
      %p299 = scmp.lt.s32.totalorder %s22, 4
      // Predicated region
      $region37: #{tpu_custom_call.1} parent=5 // pred_check
        %p300 = pneg %p299
      $region38: #{tpu_custom_call.1} parent=5 // pred_check_branch
        %302 = sbr.rel (%p300) target = $region40
      $region39: #{tpu_custom_call.1} parent=5 // pred_region
        // Predicated region
        $region41: #{tpu_custom_call.1} parent=39 // pred_check
          %p303 = pneg %p56
        $region42: #{tpu_custom_call.1} parent=39 // pred_check_branch
          %305 = sbr.rel (%p303) target = $region44
        $region43: #{tpu_custom_call.1} parent=39 // pred_region
          %p306 = scmp.lt.s32.totalorder %s29, 1
          %s307 = scalar_select %p306, %s29, 1
          %p308 = scmp.lt.s32.totalorder %s30, 1
          %s309 = scalar_select %p308, %s30, 1
          %s310 = smul.addr %s307, 2
          %s311 = sadd.s32 %s309, %s310
          %s312 = smul.addr %s311, 4
          %s313 = scalar_lea.vmem %s0, %s312
        $region44: #{tpu_custom_call.1} parent=39 // pred_fallthru
          _
        // Predicated region
        $region45: #{tpu_custom_call.1} parent=39 // pred_check
          %p314 = pneg %p82
        $region46: #{tpu_custom_call.1} parent=39 // pred_check_branch
          %316 = sbr.rel (%p314) target = $region48
        $region47: #{tpu_custom_call.1} parent=39 // pred_region
          %p317 = scmp.lt.s32.totalorder %s29, 1
          %s318 = scalar_select %p317, %s29, 1
          %s319 = scalar_lea.vmem %s1, %s318
        $region48: #{tpu_custom_call.1} parent=39 // pred_fallthru
          _
      $region40: #{tpu_custom_call.1} parent=5 // pred_fallthru
        _
      %p320 = scmp.le.s32.totalorder 1, %s22
      %p321 = scmp.lt.s32.totalorder %s22, 5
      %p322 = pnand %p320, %p321
      %p323 = pneg %p322
      // Predicated region
      $region49: #{tpu_custom_call.1} parent=5 // pred_check
        _
      $region50: #{tpu_custom_call.1} parent=5 // pred_check_branch
        %325 = sbr.rel (%p322) target = $region52
      $region51: #{tpu_custom_call.1} parent=5 // pred_region
        %s326 = ssub.s32 %s22, 1
        %p327 = scmp.lt.s32.totalorder %s31, 1
        %s328 = scalar_select %p327, %s31, 1
        %p329 = scmp.lt.s32.totalorder %s32, 1
        %s330 = scalar_select %p329, %s32, 1
        %s331 = smul.addr %s328, 2
        %s332 = sadd.s32 %s330, %s331
        %s333 = smul.addr %s332, 4
        %s334 = scalar_lea.vmem %s0, %s333
        %p335 = pneg %p62
        %p336 = pneg %p59
        %p337 = scmp.lt.s32.totalorder %s31, 1
        %s338 = scalar_select %p337, %s31, 1
        %s339 = scalar_lea.vmem %s1, %s338
        %p340 = pneg %p88
        %p341 = pneg %p85
        %p342 = pneg %p109
        %p343 = pneg %p106
        %p344 = pneg %p130
        %p345 = pneg %p127
        %p346 = pneg %p151
        %p347 = pneg %p148
        %p348 = pneg %p172
        %p349 = pneg %p169
        %p350 = pneg %p193
        %p351 = pneg %p190
        %p352 = pneg %p214
        %p353 = pneg %p211
        %p354 = pneg %p240
        %p355 = pneg %p237
        %s356 = sand.u32 %s227, 1
        %s357 = scalar_lea.sflag [#allocation4], %s356
        %s358 = sand.u32 %s227, 1
        %s359 = scalar_lea.vmem [#allocation3], %s358
        %p360 = pneg %p266
        %p361 = pneg %p263
        %s362 = sand.u32 %s253, 1
        %s363 = scalar_lea.sflag [#allocation6], %s362
        %s364 = sand.u32 %s253, 1
        %s365 = scalar_lea.vmem [#allocation5], %s364
        %p366 = scmp.lt.s32.totalorder %s31, 1
        %s367 = scalar_select %p366, %s31, 1
        %p368 = scmp.lt.s32.totalorder %s32, 1
        %s369 = scalar_select %p368, %s32, 1
        %s370 = smul.addr %s367, 2
        %s371 = sadd.s32 %s369, %s370
        %s372 = smul.addr %s371, 4
        %s373 = scalar_lea.vmem %s0, %s372
        %p374 = scmp.lt.s32.totalorder %s31, 1
        %s375 = scalar_select %p374, %s31, 1
        %s376 = scalar_lea.vmem %s1, %s375
        %p377 = scmp.eq.s32.totalorder %s32, 0
        // Predicated region
        $region53: #{tpu_custom_call.1} parent=51 // pred_check
          %p378 = pneg %p377
        $region54: #{tpu_custom_call.1} parent=51 // pred_check_branch
          %380 = sbr.rel (%p378) target = $region56
        $region55: #{tpu_custom_call.1} parent=51 // pred_region
          %vm381 = vcmask 24576
          %382 = vst.msk [vmem:[#allocation2] sm:$0x1] %vm381, 0.0
        $region56: #{tpu_custom_call.1} parent=51 // pred_fallthru
          _
        %v383 = vld [vmem:[%s373] sm:$0xf]
        %v384 = vld [vmem:[#allocation2] sm:$0x1]
        %vm385 = vcmask 1043456
        %v386 = vsel %vm385, %v383, 0.0
        %387 = vadd.xlane.f32.xlu0 %v386
        %v388 = vpop.xlane.xlu0 %387
        %v390 = vlaneseq
        %v391 = vshrl.u32 %v390, 7
        %v392 = vsub.s32 0, %v391
        %v393 = vrot.slane %v388, %v392
        %v394 = vlaneseq
        %v395 = vshrl.u32 %v394, 7
        %v396 = vsub.s32 1, %v395
        %v397 = vrot.slane %v388, %v396
        %v398 = vlaneseq
        %v399 = vshrl.u32 %v398, 7
        %v400 = vsub.s32 2, %v399
        %v401 = vrot.slane %v388, %v400
        %v402 = vlaneseq
        %v403 = vshrl.u32 %v402, 7
        %v404 = vsub.s32 3, %v403
        %v405 = vrot.slane %v388, %v404
        %v406 = vcombine.low %v393, %v397
        %v407 = vcombine.low %v401, %v405
        %v409 = vunpack.c.l.s4 1966171168
        %v410 = vunpack.c.0.s8 %v409
        %v411 = vlaneseq
        %v412 = vshrl.u32 %v411, 7
        %v413 = vsub.s32 %v410, %v412
        %v414 = vrot.slane %v406, %v413
        %v416 = vunpack.c.l.s4 1966171168
        %v417 = vunpack.c.0.s8 %v416
        %v418 = vlaneseq
        %v419 = vshrl.u32 %v418, 7
        %v420 = vsub.s32 %v417, %v419
        %v421 = vrot.slane %v407, %v420
        %v422 = vcombine.low %v414, %v421
        %v424 = vunpack.c.l.s4 1966171168
        %v425 = vunpack.c.0.s8 %v424
        %v426 = vlaneseq
        %v427 = vshrl.u32 %v426, 7
        %v428 = vsub.s32 %v425, %v427
        %v429 = vrot.slane %v422, %v428
        %430 = vset.pattern.permute.xlu0 0
        %431 = vperm.xlu0 %430, %v429
        %v432 = vpop.permute.xlu0 %431
        %v433 = vlaneseq
        %v434 = vand.u32 %v433, 127
        %v435 = vlaneseq
        %v436 = vshrl.u32 %v435, 7
        %v437 = vsub.s32 %v434, %v436
        %v438 = vrot.slane %v432, %v437
        %v440 = vunpack.c.l.s4 1966171168
        %v441 = vunpack.c.0.s8 %v440
        %v442 = vlaneseq
        %v443 = vshrl.u32 %v442, 7
        %v444 = vsub.s32 %v441, %v443
        %v445 = vrot.slane %v438, %v444
        %v447 = vunpack.c.l.s4 1966171168
        %v448 = vunpack.c.0.s8 %v447
        %v449 = vlaneseq
        %v450 = vshrl.u32 %v449, 7
        %v451 = vsub.s32 %v448, %v450
        %v452 = vrot.slane %v445, %v451
        %v454 = vadd.f32 %v384, %v452
        %vm455 = vcmask 24576
        %456 = vst.msk [vmem:[#allocation2] sm:$0x1] %vm455, %v454
        %p457 = scmp.eq.s32.totalorder %s32, 1
        // Predicated region
        $region57: #{tpu_custom_call.1} parent=51 // pred_check
          %p458 = pneg %p457
        $region58: #{tpu_custom_call.1} parent=51 // pred_check_branch
          %460 = sbr.rel (%p458) target = $region60
        $region59: #{tpu_custom_call.1} parent=51 // pred_region
          %v461 = vld [vmem:[#allocation2] sm:$0x1]
          %v462 = vmul.f32 %v461, 0.00390625
          %v463 = vld [vmem:[%s2] sm:$0xf]
          %v464 = vld [vmem:[%s3] sm:$0x1]
          %vm465 = vcmask 31744
          %v467 = vsel %vm465, %v462, 0
          %v470 = vsel %vm385, %v463, 0
          %472 = vmatprep.subr.mxu0 0.0
          %473 = vmatpush1.msra.mxu0 %v470
          %474 = vmatprep.subr.mxu0 0.0
          %475 = vmatpush1.msra.mxu0 0.0
          %476 = vmatprep.subr.mxu0 0.0
          %477 = vmatpush1.msra.mxu0 0.0
          %478 = vmatprep.subr.mxu0 0.0
          %479 = vmatpush1.msra.mxu0 0.0
          %480 = vmatprep.subr.mxu0 0.0
          %481 = vmatpush1.msra.mxu0 0.0
          %482 = vmatprep.subr.mxu0 0.0
          %483 = vmatpush1.msra.mxu0 0.0
          %484 = vmatprep.subr.mxu0 0.0
          %485 = vmatpush1.msra.mxu0 0.0
          %486 = vmatprep.subr.mxu0 0.0
          %487 = vmatpush1.msra.mxu0 0.0
          %488 = vmatprep.subr.mxu0 0.0
          %489 = vmatpush1.msra.mxu0 0.0
          %490 = vmatprep.subr.mxu0 0.0
          %491 = vmatpush1.msra.mxu0 0.0
          %492 = vmatprep.subr.mxu0 0.0
          %493 = vmatpush1.msra.mxu0 0.0
          %494 = vmatprep.subr.mxu0 0.0
          %495 = vmatpush1.msra.mxu0 0.0
          %496 = vmatprep.subr.mxu0 0.0
          %497 = vmatpush1.msra.mxu0 0.0
          %498 = vmatprep.subr.mxu0 0.0
          %499 = vmatpush1.msra.mxu0 0.0
          %500 = vmatprep.subr.mxu0 0.0
          %501 = vmatpush1.msra.mxu0 0.0
          %502 = vmatprep.subr.mxu0 0.0
          %503 = vmatpush1.msra.mxu0 0.0
          %504 = vmatprep.subr.mxu0 0.0
          %505 = vmatpush1.msra.mxu0 0.0
          %506 = vmatprep.subr.mxu0 0.0
          %507 = vmatpush1.msra.mxu0 0.0
          %508 = vmatprep.subr.mxu0 0.0
          %509 = vmatpush1.msra.mxu0 0.0
          %510 = vmatprep.subr.mxu0 0.0
          %511 = vmatpush1.msra.mxu0 0.0
          %512 = vmatprep.subr.mxu0 0.0
          %513 = vmatpush1.msra.mxu0 0.0
          %514 = vmatprep.subr.mxu0 0.0
          %515 = vmatpush1.msra.mxu0 0.0
          %516 = vmatprep.subr.mxu0 0.0
          %517 = vmatpush1.msra.mxu0 0.0
          %518 = vmatprep.subr.mxu0 0.0
          %519 = vmatpush1.msra.mxu0 0.0
          %520 = vmatprep.subr.mxu0 0.0
          %521 = vmatpush1.msra.mxu0 0.0
          %522 = vmatprep.subr.mxu0 0.0
          %523 = vmatpush1.msra.mxu0 0.0
          %524 = vmatprep.subr.mxu0 0.0
          %525 = vmatpush1.msra.mxu0 0.0
          %526 = vmatprep.subr.mxu0 0.0
          %527 = vmatpush1.msra.mxu0 0.0
          %528 = vmatprep.subr.mxu0 0.0
          %529 = vmatpush1.msra.mxu0 0.0
          %530 = vmatprep.subr.mxu0 0.0
          %531 = vmatpush1.msra.mxu0 0.0
          %532 = vmatprep.subr.mxu0 0.0
          %533 = vmatpush1.msra.mxu0 0.0
          %534 = vmatprep.subr.mxu0 0.0
          %535 = vmatpush1.msra.mxu0 0.0
          %536 = vmatprep.mubr.f32.mxu0 0.0
          %537 = vmatmul.mubr.f32.gmra.mrb[0].mxu0 %v467
          %v538 = vpop.f32.mrb[0].mxu0
          %v539 = vadd.f32 %v464, %v538
          %v540 = vpop.f32.mrb[0].mxu0
          %541 = vdwg.mxu0
          %v542 = vmax.f32 %v539, 0.0
          %v543 = vld [vmem:[%s4] sm:$0xff]
          %v544 = vld [vmem:[%s4 + $0x8] sm:$0xff]
          %v545 = vld [vmem:[%s4 + $0x10] sm:$0xff]
          %v546 = vld [vmem:[%s4 + $0x18] sm:$0xff]
          %v547 = vld [vmem:[%s4 + $0x20] sm:$0xff]
          %v548 = vld [vmem:[%s4 + $0x28] sm:$0xff]
          %v549 = vld [vmem:[%s4 + $0x30] sm:$0xff]
          %v550 = vld [vmem:[%s4 + $0x38] sm:$0xff]
          %v551 = vld [vmem:[%s4 + $0x40] sm:$0xff]
          %v552 = vld [vmem:[%s4 + $0x48] sm:$0xff]
          %v553 = vld [vmem:[%s4 + $0x50] sm:$0xff]
          %v554 = vld [vmem:[%s4 + $0x58] sm:$0xff]
          %v555 = vld [vmem:[%s4 + $0x60] sm:$0xff]
          %v556 = vld [vmem:[%s4 + $0x68] sm:$0xff]
          %v557 = vld [vmem:[%s4 + $0x70] sm:$0xff]
          %v558 = vld [vmem:[%s4 + $0x78] sm:$0xff]
          %v559 = vld [vmem:[%s5] sm:$0x1]
          %560 = vmatprep.subr.mxu0 0.0
          %561 = vmatpush1.msra.mxu0 %v543
          %562 = vmatprep.subr.mxu0 0.0
          %563 = vmatpush1.msra.mxu0 %v544
          %564 = vmatprep.subr.mxu0 0.0
          %565 = vmatpush1.msra.mxu0 %v545
          %566 = vmatprep.subr.mxu0 0.0
          %567 = vmatpush1.msra.mxu0 %v546
          %568 = vmatprep.subr.mxu0 0.0
          %569 = vmatpush1.msra.mxu0 %v547
          %570 = vmatprep.subr.mxu0 0.0
          %571 = vmatpush1.msra.mxu0 %v548
          %572 = vmatprep.subr.mxu0 0.0
          %573 = vmatpush1.msra.mxu0 %v549
          %574 = vmatprep.subr.mxu0 0.0
          %575 = vmatpush1.msra.mxu0 %v550
          %576 = vmatprep.subr.mxu0 0.0
          %577 = vmatpush1.msra.mxu0 %v551
          %578 = vmatprep.subr.mxu0 0.0
          %579 = vmatpush1.msra.mxu0 %v552
          %580 = vmatprep.subr.mxu0 0.0
          %581 = vmatpush1.msra.mxu0 %v553
          %582 = vmatprep.subr.mxu0 0.0
          %583 = vmatpush1.msra.mxu0 %v554
          %584 = vmatprep.subr.mxu0 0.0
          %585 = vmatpush1.msra.mxu0 %v555
          %586 = vmatprep.subr.mxu0 0.0
          %587 = vmatpush1.msra.mxu0 %v556
          %588 = vmatprep.subr.mxu0 0.0
          %589 = vmatpush1.msra.mxu0 %v557
          %590 = vmatprep.subr.mxu0 0.0
          %591 = vmatpush1.msra.mxu0 %v558
          %592 = vmatprep.subr.mxu0 0.0
          %593 = vmatpush1.msra.mxu0 0.0
          %594 = vmatprep.subr.mxu0 0.0
          %595 = vmatpush1.msra.mxu0 0.0
          %596 = vmatprep.subr.mxu0 0.0
          %597 = vmatpush1.msra.mxu0 0.0
          %598 = vmatprep.subr.mxu0 0.0
          %599 = vmatpush1.msra.mxu0 0.0
          %600 = vmatprep.subr.mxu0 0.0
          %601 = vmatpush1.msra.mxu0 0.0
          %602 = vmatprep.subr.mxu0 0.0
          %603 = vmatpush1.msra.mxu0 0.0
          %604 = vmatprep.subr.mxu0 0.0
          %605 = vmatpush1.msra.mxu0 0.0
          %606 = vmatprep.subr.mxu0 0.0
          %607 = vmatpush1.msra.mxu0 0.0
          %608 = vmatprep.subr.mxu0 0.0
          %609 = vmatpush1.msra.mxu0 0.0
          %610 = vmatprep.subr.mxu0 0.0
          %611 = vmatpush1.msra.mxu0 0.0
          %612 = vmatprep.subr.mxu0 0.0
          %613 = vmatpush1.msra.mxu0 0.0
          %614 = vmatprep.subr.mxu0 0.0
          %615 = vmatpush1.msra.mxu0 0.0
          %616 = vmatprep.subr.mxu0 0.0
          %617 = vmatpush1.msra.mxu0 0.0
          %618 = vmatprep.subr.mxu0 0.0
          %619 = vmatpush1.msra.mxu0 0.0
          %620 = vmatprep.subr.mxu0 0.0
          %621 = vmatpush1.msra.mxu0 0.0
          %622 = vmatprep.subr.mxu0 0.0
          %623 = vmatpush1.msra.mxu0 0.0
          %624 = vmatprep.mubr.f32.mxu0 0.0
          %625 = vmatmul.mubr.f32.gmra.mrb[0].mxu0 %v542
          %v626 = vpop.f32.mrb[0].mxu0
          %v627 = vadd.f32 %v559, %v626
          %v628 = vpop.f32.mrb[0].mxu0
          %629 = vdwg.mxu0
          %v630 = vxor.u32 %v627, 2147483648
          %v631 = vmul.f32 %v630, 1.442695
          %v632 = vpow.pop %v631
          %v633 = vadd.f32 %v632, 1.0
          %v634 = vrcp.pop %v633
          %v635 = vmul.f32 1.0, %v634
          %v636 = vmul.f32 %v462, %v635
          %v637 = vld [vmem:[%s6] sm:$0xf]
          %v638 = vld [vmem:[%s7] sm:$0x1]
          %v640 = vsel %vm465, %v636, 0
          %v643 = vsel %vm385, %v637, 0
          %645 = vmatprep.subr.mxu0 0.0
          %646 = vmatpush1.msra.mxu0 %v643
          %647 = vmatprep.subr.mxu0 0.0
          %648 = vmatpush1.msra.mxu0 0.0
          %649 = vmatprep.subr.mxu0 0.0
          %650 = vmatpush1.msra.mxu0 0.0
          %651 = vmatprep.subr.mxu0 0.0
          %652 = vmatpush1.msra.mxu0 0.0
          %653 = vmatprep.subr.mxu0 0.0
          %654 = vmatpush1.msra.mxu0 0.0
          %655 = vmatprep.subr.mxu0 0.0
          %656 = vmatpush1.msra.mxu0 0.0
          %657 = vmatprep.subr.mxu0 0.0
          %658 = vmatpush1.msra.mxu0 0.0
          %659 = vmatprep.subr.mxu0 0.0
          %660 = vmatpush1.msra.mxu0 0.0
          %661 = vmatprep.subr.mxu0 0.0
          %662 = vmatpush1.msra.mxu0 0.0
          %663 = vmatprep.subr.mxu0 0.0
          %664 = vmatpush1.msra.mxu0 0.0
          %665 = vmatprep.subr.mxu0 0.0
          %666 = vmatpush1.msra.mxu0 0.0
          %667 = vmatprep.subr.mxu0 0.0
          %668 = vmatpush1.msra.mxu0 0.0
          %669 = vmatprep.subr.mxu0 0.0
          %670 = vmatpush1.msra.mxu0 0.0
          %671 = vmatprep.subr.mxu0 0.0
          %672 = vmatpush1.msra.mxu0 0.0
          %673 = vmatprep.subr.mxu0 0.0
          %674 = vmatpush1.msra.mxu0 0.0
          %675 = vmatprep.subr.mxu0 0.0
          %676 = vmatpush1.msra.mxu0 0.0
          %677 = vmatprep.subr.mxu0 0.0
          %678 = vmatpush1.msra.mxu0 0.0
          %679 = vmatprep.subr.mxu0 0.0
          %680 = vmatpush1.msra.mxu0 0.0
          %681 = vmatprep.subr.mxu0 0.0
          %682 = vmatpush1.msra.mxu0 0.0
          %683 = vmatprep.subr.mxu0 0.0
          %684 = vmatpush1.msra.mxu0 0.0
          %685 = vmatprep.subr.mxu0 0.0
          %686 = vmatpush1.msra.mxu0 0.0
          %687 = vmatprep.subr.mxu0 0.0
          %688 = vmatpush1.msra.mxu0 0.0
          %689 = vmatprep.subr.mxu0 0.0
          %690 = vmatpush1.msra.mxu0 0.0
          %691 = vmatprep.subr.mxu0 0.0
          %692 = vmatpush1.msra.mxu0 0.0
          %693 = vmatprep.subr.mxu0 0.0
          %694 = vmatpush1.msra.mxu0 0.0
          %695 = vmatprep.subr.mxu0 0.0
          %696 = vmatpush1.msra.mxu0 0.0
          %697 = vmatprep.subr.mxu0 0.0
          %698 = vmatpush1.msra.mxu0 0.0
          %699 = vmatprep.subr.mxu0 0.0
          %700 = vmatpush1.msra.mxu0 0.0
          %701 = vmatprep.subr.mxu0 0.0
          %702 = vmatpush1.msra.mxu0 0.0
          %703 = vmatprep.subr.mxu0 0.0
          %704 = vmatpush1.msra.mxu0 0.0
          %705 = vmatprep.subr.mxu0 0.0
          %706 = vmatpush1.msra.mxu0 0.0
          %707 = vmatprep.subr.mxu0 0.0
          %708 = vmatpush1.msra.mxu0 0.0
          %709 = vmatprep.mubr.f32.mxu0 0.0
          %710 = vmatmul.mubr.f32.gmra.mrb[0].mxu0 %v640
          %v711 = vpop.f32.mrb[0].mxu0
          %v712 = vadd.f32 %v638, %v711
          %v713 = vpop.f32.mrb[0].mxu0
          %714 = vdwg.mxu0
          %715 = vst [vmem:[%s359] sm:$0x1] %v712
          %v716 = vld [vmem:[%s376] sm:$0x1]
          %vm717 = vcmp.lt.s32.totalorder %v434, 10
          %v718 = vsel %vm717, %v716, -3.4028235e+38
          %vm719 = vcmask 1040384
          %v720 = vsel %vm719, %v718, -inf
          %721 = vmax.xlane.f32.xlu0 %v720
          %v722 = vpop.xlane.xlu0 %721
          %vm723 = vcmp.eq.f32.partialorder %v718, %v722
          %v724 = vsel %vm723, %v434, 128
          %v725 = vsel %vm719, %v724, 2147483647
          %v726 = vand.u32 %v725, 65535
          %v727 = vshra.s32 %v725, 16
          %v728 = vcvt.s32.f32 %v726
          %v729 = vcvt.s32.f32 %v727
          %730 = vmin.xlane.f32.xlu0 %v729
          %v731 = vpop.xlane.xlu0 %730
          %vm732 = vcmp.eq.f32.partialorder %v729, %v731
          %v733 = vsel %vm732, %v728, inf
          %734 = vmin.xlane.f32.xlu0 %v733
          %v735 = vpop.xlane.xlu0 %734
          %v736 = vcvt.f32.s32 %v735
          %v737 = vcvt.f32.s32 %v731
          %v738 = vshll.u32 %v737, 16
          %v739 = vadd.s32 %v738, %v736
          %vm740 = vcmp.eq.s32.totalorder %v434, %v739
          %v741 = vsel %vm740, 1, 0
          %v742 = vcvt.s32.f32 %v741
          %v743 = vsel %vm717, %v712, -3.4028235e+38
          %v744 = vsel %vm719, %v743, -inf
          %745 = vmax.xlane.f32.xlu0 %v744
          %v746 = vpop.xlane.xlu0 %745
          %v747 = vsub.f32 %v743, %v746
          %v748 = vmul.f32 %v747, 1.442695
          %v749 = vpow.pop %v748
          %v750 = vsel %vm719, %v749, 0.0
          %751 = vadd.xlane.f32.xlu0 %v750
          %v752 = vpop.xlane.xlu0 %751
          %v753 = vlog2.pop %v752
          %v754 = vmul.f32 %v753, 0.6931472
          %v755 = vadd.f32 %v754, %v746
          %v756 = vsub.f32 %v755, %v712
          %v757 = vmul.f32 %v742, %v756
          %v758 = vsel %vm719, %v757, 0.0
          %759 = vadd.xlane.f32.xlu0 %v758
          %v760 = vpop.xlane.xlu0 %759
          %761 = vst [vmem:[%s365] sm:$0x1] %v760
        $region60: #{tpu_custom_call.1} parent=51 // pred_fallthru
          _
        %s762 = sand.u32 %s227, 1
        %s763 = scalar_lea.sflag [#allocation4], %s762
        %s764 = sand.u32 %s227, 1
        %s765 = scalar_lea.vmem [#allocation3], %s764
        %s766 = sand.u32 %s253, 1
        %s767 = scalar_lea.sflag [#allocation6], %s766
        %s768 = sand.u32 %s253, 1
        %s769 = scalar_lea.vmem [#allocation5], %s768
        // Predicated region
        $region61: #{tpu_custom_call.1} parent=51 // pred_check
          %p770 = pneg %p237
        $region62: #{tpu_custom_call.1} parent=51 // pred_check_branch
          %772 = sbr.rel (%p770) target = $region64
        $region63: #{tpu_custom_call.1} parent=51 // pred_region
          %s774 = ssub.s32 16, 16
          %775 = vsyncadd %s763, %s774
          %s776 = smul.addr %s31, 16
          %s777 = scalar_lea.hbm %s8, %s776
          %s779 = sshll.u32 %s765, 4
          %s780 = int_to_ptr.vmem [resolvable:$true] %s779
          %782 = dma.vmem_to_hbm [thread:$0]  %s780, 16, %s777, %s763
        $region64: #{tpu_custom_call.1} parent=51 // pred_fallthru
          _
        // Predicated region
        $region65: #{tpu_custom_call.1} parent=51 // pred_check
          %p783 = pneg %p263
        $region66: #{tpu_custom_call.1} parent=51 // pred_check_branch
          %785 = sbr.rel (%p783) target = $region68
        $region67: #{tpu_custom_call.1} parent=51 // pred_region
          %s787 = ssub.s32 16, 16
          %788 = vsyncadd %s767, %s787
          %s789 = smul.addr %s31, 16
          %s790 = scalar_lea.hbm %s9, %s789
          %s792 = sshll.u32 %s769, 4
          %s793 = int_to_ptr.vmem [resolvable:$true] %s792
          %795 = dma.vmem_to_hbm [thread:$0]  %s793, 16, %s790, %s767
        $region68: #{tpu_custom_call.1} parent=51 // pred_fallthru
          _
      $region52: #{tpu_custom_call.1} parent=5 // pred_fallthru
        _
      %p796 = scmp.le.s32.totalorder 2, %s22
      // Predicated region
      $region69: #{tpu_custom_call.1} parent=5 // pred_check
        %p797 = pneg %p796
      $region70: #{tpu_custom_call.1} parent=5 // pred_check_branch
        %799 = sbr.rel (%p797) target = $region72
      $region71: #{tpu_custom_call.1} parent=5 // pred_region
        %s800 = ssub.s32 %s22, 2
        // Predicated region
        $region73: #{tpu_custom_call.1} parent=71 // pred_check
          %p801 = pneg %p243
        $region74: #{tpu_custom_call.1} parent=71 // pred_check_branch
          %803 = sbr.rel (%p801) target = $region76
        $region75: #{tpu_custom_call.1} parent=71 // pred_region
          %s804 = sand.u32 %s228, 1
          %s805 = scalar_lea.sflag [#allocation4], %s804
          %s806 = sand.u32 %s228, 1
          %s807 = scalar_lea.vmem [#allocation3], %s806
          %808 = dma.done %s805, 16
        $region76: #{tpu_custom_call.1} parent=71 // pred_fallthru
          _
        // Predicated region
        $region77: #{tpu_custom_call.1} parent=71 // pred_check
          %p809 = pneg %p269
        $region78: #{tpu_custom_call.1} parent=71 // pred_check_branch
          %811 = sbr.rel (%p809) target = $region80
        $region79: #{tpu_custom_call.1} parent=71 // pred_region
          %s812 = sand.u32 %s254, 1
          %s813 = scalar_lea.sflag [#allocation6], %s812
          %s814 = sand.u32 %s254, 1
          %s815 = scalar_lea.vmem [#allocation5], %s814
          %816 = dma.done %s813, 16
        $region80: #{tpu_custom_call.1} parent=71 // pred_fallthru
          _
      $region72: #{tpu_custom_call.1} parent=5 // pred_fallthru
        _
    $region6: #{tpu_custom_call.1} parent=1 // loop_footer
      %s26 = sadd.s32 1, %s22
    $region7: #{tpu_custom_call.1} parent=1 // loop_footer_branch
      %21 = sbr.rel target = $region3
    $region8: #{tpu_custom_call.1} parent=1 // loop_exit
      _
    %817 = vsyncpa [#allocation4], 1
    %s818 = scalar_lea.sflag [#allocation4], 1
    %819 = vsyncpa %s818, 1
    %820 = vsyncpa [#allocation6], 1
    %s821 = scalar_lea.sflag [#allocation6], 1
    %822 = vsyncpa %s821, 1

</llo_original>
